<compile_context>
chip_gen: v5e
topology: v5e:2x2
jax: 0.10.0
libtpu: 0.0.40
codegen_flags: <defaults>
</compile_context>

<pallas_src>
import functools

import jax
import jax.numpy as jnp
from jax.experimental import pallas as pl
from jax.experimental.pallas import tpu as pltpu

LANE = 128      # vreg lane width  (last dim)
SUBLANE = 8     # vreg sublane width (second-to-last dim)


def _round_up(n, m):
    return ((n + m - 1) // m) * m


def _pad2d(a, rows, cols):
    r, c = a.shape
    return jnp.pad(a, ((0, rows - r), (0, cols - c)))


# ----------------------------------------------------------------------------
# Probe: single-buffering of grid-invariant inputs (pl.Buffered(1)) supported?
# ----------------------------------------------------------------------------
@functools.lru_cache(maxsize=1)
def _single_buffer_supported():
    try:
        def _k(a_ref, o_ref):
            o_ref[...] = a_ref[...] + 1.0

        f = pl.pallas_call(
            _k,
            grid=(2,),
            in_specs=[pl.BlockSpec((8, 128), lambda i: (0, 0),
                                   pipeline_mode=pl.Buffered(1))],
            out_specs=pl.BlockSpec((8, 128), lambda i: (i, 0)),
            out_shape=jax.ShapeDtypeStruct((16, 128), jnp.float32),
        )
        jax.block_until_ready(f(jnp.zeros((8, 128), jnp.float32)))
        return True
    except Exception:
        return False


# ----------------------------------------------------------------------------
# Fused VAE forward kernel (one batch tile per grid step)
# ----------------------------------------------------------------------------
def _make_vae_kernel(n_enc, n_dec, dec_relu, lat_p):
    """Builds the fused kernel for a fixed layer structure.

    Ref order: x, eps, [enc (w,b)]*n_enc, head (w,b), [dec (w,b)]*n_dec,
               then outputs recon (bf16), heads (f32, mu|logvar fused).
    Weights are bf16 (pre-transposed, BN-folded, zero-padded); biases f32.
    """
    n_param_refs = 2 * (n_enc + 1 + n_dec)

    def kernel(x_ref, eps_ref, *refs):
        p = refs[:n_param_refs]
        recon_ref, heads_ref = refs[n_param_refs:]

        idx = 0
        # x arrives in its original dtype / unpadded width; cast here (VPU, free).
        h = x_ref[...].astype(jnp.bfloat16)             # (TB, Din)

        # ---- encoder: Linear -> ReLU (Dropout = identity in eval mode) ----
        for _ in range(n_enc):
            w = p[idx][...]
            b = p[idx + 1][...]
            idx += 2
            a = jnp.dot(h, w, preferred_element_type=jnp.float32) + b
            h = jnp.maximum(a, 0.0).astype(jnp.bfloat16)

        # ---- fused mu | logvar head: single (H, 2*lat_p) matmul, one store ----
        w = p[idx][...]
        b = p[idx + 1][...]
        idx += 2
        heads = jnp.dot(h, w, preferred_element_type=jnp.float32) + b
        heads_ref[...] = heads                          # (TB, 2*lat_p) f32
        mu = heads[:, :lat_p]
        logvar = heads[:, lat_p:]

        # ---- reparameterize: z = mu + eps * exp(0.5 * logvar) ----
        std = jnp.exp(0.5 * logvar)                     # EUP
        z = mu + eps_ref[...] * std
        h = z.astype(jnp.bfloat16)

        # ---- decoder: Linear(+folded eval BN) -> optional ReLU ----
        for li in range(n_dec):
            w = p[idx][...]
            b = p[idx + 1][...]
            idx += 2
            a = jnp.dot(h, w, preferred_element_type=jnp.float32) + b
            if dec_relu[li]:
                a = jnp.maximum(a, 0.0)
            if li < n_dec - 1:
                h = a.astype(jnp.bfloat16)
            else:
                recon_ref[...] = a.astype(recon_ref.dtype)   # bf16, unpadded Fout

    return kernel


# ----------------------------------------------------------------------------
# Parameter construction: raw (f32, PyTorch layout) + kernel-ready (padded bf16)
# ----------------------------------------------------------------------------
def _make_linear(key, fan_in, fan_out):
    kw, kb = jax.random.split(key)
    w = jax.random.normal(kw, (fan_out, fan_in), jnp.float32) * 0.05
    b = jax.random.normal(kb, (fan_out,), jnp.float32) * 0.01
    return {"w": w, "b": b}


def _prep_layer(w, b, fin_p, fout_p, bn=False):
    """Transpose to (Fin, Fout), fold eval-mode BN, pad, cast bf16."""
    wt = jnp.asarray(w, jnp.float32).T                  # (Fin, Fout)
    bb = jnp.asarray(b, jnp.float32)
    if bn:
        # eval-mode BatchNorm1d, default stats: gamma=1, beta=0, mean=0, var=1
        # TODO(synk): with trained stats use scale=gamma/sqrt(var+eps), shift=beta-mean*scale
        scale = 1.0 / jnp.sqrt(1.0 + 1e-5)
        wt = wt * scale
        bb = bb * scale
    fout = wt.shape[1]
    w_p = _pad2d(wt, fin_p, fout_p).astype(jnp.bfloat16)
    b_p = jnp.zeros((1, fout_p), jnp.float32).at[0, :fout].set(bb)
    return w_p, b_p


def init_vae_params(key, input_dim, latent_dim, hidden_dims):
    hidden_dims = list(hidden_dims)
    raw = {"encoder": [], "decoder": []}

    enc_dims = [input_dim] + hidden_dims
    for i in range(len(hidden_dims)):
        key, sub = jax.random.split(key)
        raw["encoder"].append(_make_linear(sub, enc_dims[i], enc_dims[i + 1]))

    key, k_mu, k_lv = jax.random.split(key, 3)
    raw["fc_mu"] = _make_linear(k_mu, hidden_dims[-1], latent_dim)
    raw["fc_logvar"] = _make_linear(k_lv, hidden_dims[-1], latent_dim)

    key, sub = jax.random.split(key)
    raw["decoder"].append({"lin": _make_linear(sub, latent_dim, hidden_dims[-1]),
                           "bn": False, "relu": True})
    for i in range(len(hidden_dims) - 1, 0, -1):
        key, sub = jax.random.split(key)
        raw["decoder"].append({"lin": _make_linear(sub, hidden_dims[i], hidden_dims[i - 1]),
                               "bn": True, "relu": True})
    key, sub = jax.random.split(key)
    raw["decoder"].append({"lin": _make_linear(sub, hidden_dims[0], input_dim),
                           "bn": False, "relu": False})

    # ---- kernel-ready flat parameter list (done ONCE, not per forward) ----
    lat_p = _round_up(latent_dim, LANE)
    flat = []

    # encoder: first layer Fin stays UNPADDED (x is fed unpadded), Fout padded
    for i, layer in enumerate(raw["encoder"]):
        fin = layer["w"].shape[1]
        fout = layer["w"].shape[0]
        fin_p = fin if i == 0 else _round_up(fin, LANE)
        fout_p = _round_up(fout, LANE)
        w_p, b_p = _prep_layer(layer["w"], layer["b"], fin_p, fout_p)
        flat += [w_p, b_p]

    hlast_p = _round_up(hidden_dims[-1], LANE)
    w_mu, b_mu = _prep_layer(raw["fc_mu"]["w"], raw["fc_mu"]["b"], hlast_p, lat_p)
    w_lv, b_lv = _prep_layer(raw["fc_logvar"]["w"], raw["fc_logvar"]["b"], hlast_p, lat_p)
    flat += [jnp.concatenate([w_mu, w_lv], axis=1),     # (hlast_p, 2*lat_p)
             jnp.concatenate([b_mu, b_lv], axis=1)]     # (1, 2*lat_p)

    # decoder: last layer Fout stays UNPADDED (recon is emitted unpadded)
    n_dec = len(raw["decoder"])
    dec_relu = []
    for j, layer in enumerate(raw["decoder"]):
        w = layer["lin"]["w"]
        b = layer["lin"]["b"]
        fin_p = _round_up(w.shape[1], LANE)
        fout_p = w.shape[0] if j == n_dec - 1 else _round_up(w.shape[0], LANE)
        w_p, b_p = _prep_layer(w, b, fin_p, fout_p, bn=layer["bn"])
        flat += [w_p, b_p]
        dec_relu.append(bool(layer["relu"]))

    meta = {
        "input_dim": input_dim,
        "latent_dim": latent_dim,
        "latent_dim_p": lat_p,
        "n_enc": len(raw["encoder"]),
        "n_dec": n_dec,
        "dec_relu": tuple(dec_relu),
    }
    return {"raw": raw, "flat": flat, "meta": meta}


# ----------------------------------------------------------------------------
# Batch tiling: fat tiles for big batches, >=2 grid steps when possible
# ----------------------------------------------------------------------------
def _pick_batch_tile(B):
    Bp8 = _round_up(max(B, 1), SUBLANE)
    if Bp8 <= SUBLANE:
        return Bp8                                   # tiny batch: single tile
    if Bp8 >= 2048:
        return 512                                   # multiple of 256 for v6e/v7x MXU
    if Bp8 >= 512:
        return 256
    # modest batch: split into >=2 tiles so ("parallel",) uses both TCs on v7x
    return _round_up((Bp8 + 1) // 2, SUBLANE)


# ----------------------------------------------------------------------------
# Forward: single pallas_call, no host-side pad of x, slice outputs back
# ----------------------------------------------------------------------------
def vae_forward(params, x, eps):
    meta = params["meta"]
    flat = params["flat"]
    din, dlat = meta["input_dim"], meta["latent_dim"]
    lat_p = meta["latent_dim_p"]
    n_enc, n_dec, dec_relu = meta["n_enc"], meta["n_dec"], meta["dec_relu"]

    B = x.shape[0]
    TB = _pick_batch_tile(B)
    Bp = _round_up(B, TB)
    grid = (Bp // TB,)

    # x: UNPADDED feature dim, original (f32) dtype, cast to bf16 in-kernel.
    # Only pad the batch dim when B is not a tile multiple (usually a no-op).
    x_in = x.astype(jnp.float32)
    if Bp != B:
        x_in = jnp.pad(x_in, ((0, Bp - B), (0, 0)))
    # eps is tiny (latent dim): lane-pad so z / decoder stay lane-dense.
    eps_p = jnp.pad(eps.astype(jnp.float32), ((0, Bp - B), (0, lat_p - dlat)))

    single_buf = _single_buffer_supported()

    in_specs = [
        pl.BlockSpec((TB, din), lambda i: (i, 0)),
        pl.BlockSpec((TB, lat_p), lambda i: (i, 0)),
    ]
    # Weights/biases: constant block index -> VMEM-resident across batch tiles.
    # Single-buffer them when supported (their block never changes).
    for a in flat:
        if single_buf:
            in_specs.append(pl.BlockSpec(a.shape, lambda i: (0, 0),
                                         pipeline_mode=pl.Buffered(1)))
        else:
            in_specs.append(pl.BlockSpec(a.shape, lambda i: (0, 0)))

    out_specs = [
        pl.BlockSpec((TB, din), lambda i: (i, 0)),          # recon (bf16, unpadded)
        pl.BlockSpec((TB, 2 * lat_p), lambda i: (i, 0)),    # mu | logvar fused
    ]
    out_shape = [
        jax.ShapeDtypeStruct((Bp, din), jnp.bfloat16),
        jax.ShapeDtypeStruct((Bp, 2 * lat_p), jnp.float32),
    ]

    # ---- derived VMEM budget (instead of a hardcoded limit) ----
    weight_bytes = sum(int(a.size) * a.dtype.itemsize for a in flat)
    w_buf = 1 if single_buf else 2
    widths = [din, lat_p] + [int(w.shape[1]) for w in flat[0::2]]
    max_w = max(widths)
    io_tile_bytes = 2 * TB * (din * 4 + lat_p * 4 + din * 2 + 2 * lat_p * 4)
    act_bytes = 6 * TB * max_w * 4                      # a few live f32 tiles
    need = w_buf * weight_bytes + io_tile_bytes + act_bytes
    try:
        vmem_cap = int(pltpu.get_tpu_info().vmem_capacity_bytes)
    except Exception:
        vmem_cap = 64 * 1024 * 1024                     # conservative (v7x)
    vmem_limit = max(16 * 1024 * 1024,
                     min(int(need * 1.3) + (2 << 20), vmem_cap - (8 << 20)))

    # ---- cost estimate for the XLA scheduler ----
    flops = sum(2 * Bp * int(w.shape[0]) * int(w.shape[1]) for w in flat[0::2])
    bytes_accessed = (int(x_in.size) * 4 + int(eps_p.size) * 4 + weight_bytes
                      + Bp * din * 2 + Bp * 2 * lat_p * 4)
    cost = pl.CostEstimate(flops=int(flops),
                           transcendentals=int(Bp * lat_p),
                           bytes_accessed=int(bytes_accessed))

    kernel = _make_vae_kernel(n_enc, n_dec, dec_relu, lat_p)

    recon_p, heads_p = pl.pallas_call(
        kernel,
        grid=grid,
        in_specs=in_specs,
        out_specs=out_specs,
        out_shape=out_shape,
        compiler_params=pltpu.CompilerParams(
            dimension_semantics=("parallel",),      # batch tiles -> both TCs on v7x
            vmem_limit_bytes=vmem_limit,
        ),
        cost_estimate=cost,
    )(x_in, eps_p, *flat)

    # recon is returned in bf16 (inference-friendly, halves output HBM traffic).
    recon = recon_p[:B]
    mu = heads_p[:B, :dlat]
    logvar = heads_p[:B, lat_p:lat_p + dlat]
    return recon, mu, logvar


# ----------------------------------------------------------------------------
# Pure-JAX reference (f32, unpadded) for correctness checking
# ----------------------------------------------------------------------------
def vae_reference(raw, x, eps):
    h = x
    for layer in raw["encoder"]:
        h = jnp.maximum(h @ layer["w"].T + layer["b"], 0.0)
    mu = h @ raw["fc_mu"]["w"].T + raw["fc_mu"]["b"]
    logvar = h @ raw["fc_logvar"]["w"].T + raw["fc_logvar"]["b"]
    z = mu + eps * jnp.exp(0.5 * logvar)
    h = z
    bn_scale = 1.0 / jnp.sqrt(1.0 + 1e-5)
    for layer in raw["decoder"]:
        h = h @ layer["lin"]["w"].T + layer["lin"]["b"]
        if layer["bn"]:
            h = h * bn_scale
        if layer["relu"]:
            h = jnp.maximum(h, 0.0)
    return h, mu, logvar


if __name__ == "__main__":
    # small shapes consistent with the module's forward
    batch = 8
    input_dim = 64
    latent_dim = 16
    hidden_dims = [64, 32]

    root = jax.random.PRNGKey(0)
    k_params, k_x, k_eps = jax.random.split(root, 3)

    params = init_vae_params(k_params, input_dim, latent_dim, hidden_dims)
    x = jax.random.normal(k_x, (batch, input_dim), jnp.float32)
    eps = jax.random.normal(k_eps, (batch, latent_dim), jnp.float32)

    fwd = jax.jit(lambda xx, ee: vae_forward(params, xx, ee))
    recon, mu, logvar = fwd(x, eps)
    jax.block_until_ready((recon, mu, logvar))

    assert recon.shape == (batch, input_dim)
    assert mu.shape == (batch, latent_dim)
    assert logvar.shape == (batch, latent_dim)

    # correctness vs. pure-JAX f32 reference (kernel uses bf16 weights -> loose tol)
    r_ref, mu_ref, lv_ref = vae_reference(params["raw"], x, eps)
    for got, ref in ((recon, r_ref), (mu, mu_ref), (logvar, lv_ref)):
        err = float(jnp.max(jnp.abs(got.astype(jnp.float32) - ref)))
        assert err < 0.1, f"max abs err {err}"

    print("KERNEL_OK")
</pallas_src>

<mosaic_0001>
module attributes {stable_mosaic.version = 11 : i64} {
  func.func @kernel(%arg0: i32, %arg1: memref<8x64xf32, #tpu.memory_space<vmem>>, %arg2: memref<8x128xf32, #tpu.memory_space<vmem>>, %arg3: memref<64x128xbf16, #tpu.memory_space<vmem>>, %arg4: memref<1x128xf32, #tpu.memory_space<vmem>>, %arg5: memref<128x128xbf16, #tpu.memory_space<vmem>>, %arg6: memref<1x128xf32, #tpu.memory_space<vmem>>, %arg7: memref<128x256xbf16, #tpu.memory_space<vmem>>, %arg8: memref<1x256xf32, #tpu.memory_space<vmem>>, %arg9: memref<128x128xbf16, #tpu.memory_space<vmem>>, %arg10: memref<1x128xf32, #tpu.memory_space<vmem>>, %arg11: memref<128x128xbf16, #tpu.memory_space<vmem>>, %arg12: memref<1x128xf32, #tpu.memory_space<vmem>>, %arg13: memref<128x64xbf16, #tpu.memory_space<vmem>>, %arg14: memref<1x64xf32, #tpu.memory_space<vmem>>, %arg15: memref<8x64xbf16, #tpu.memory_space<vmem>>, %arg16: memref<8x256xf32, #tpu.memory_space<vmem>>) attributes {dimension_semantics = [#tpu.dimension_semantics<parallel>], iteration_bounds = array<i64: 1>, scalar_prefetch = 0 : i64, scratch_operands = 0 : i64, tpu.core_type = #tpu.core_type<tc>, window_params = [{transform_indices = @transform_0, window_bounds = array<i64: 8, 64>}, {transform_indices = @transform_1, window_bounds = array<i64: 8, 128>}, {pipeline_mode = #tpu.pipeline_mode<synchronous>, transform_indices = @transform_2, window_bounds = array<i64: 64, 128>}, {pipeline_mode = #tpu.pipeline_mode<synchronous>, transform_indices = @transform_3, window_bounds = array<i64: 1, 128>}, {pipeline_mode = #tpu.pipeline_mode<synchronous>, transform_indices = @transform_4, window_bounds = array<i64: 128, 128>}, {pipeline_mode = #tpu.pipeline_mode<synchronous>, transform_indices = @transform_5, window_bounds = array<i64: 1, 128>}, {pipeline_mode = #tpu.pipeline_mode<synchronous>, transform_indices = @transform_6, window_bounds = array<i64: 128, 256>}, {pipeline_mode = #tpu.pipeline_mode<synchronous>, transform_indices = @transform_7, window_bounds = array<i64: 1, 256>}, {pipeline_mode = #tpu.pipeline_mode<synchronous>, transform_indices = @transform_8, window_bounds = array<i64: 128, 128>}, {pipeline_mode = #tpu.pipeline_mode<synchronous>, transform_indices = @transform_9, window_bounds = array<i64: 1, 128>}, {pipeline_mode = #tpu.pipeline_mode<synchronous>, transform_indices = @transform_10, window_bounds = array<i64: 128, 128>}, {pipeline_mode = #tpu.pipeline_mode<synchronous>, transform_indices = @transform_11, window_bounds = array<i64: 1, 128>}, {pipeline_mode = #tpu.pipeline_mode<synchronous>, transform_indices = @transform_12, window_bounds = array<i64: 128, 64>}, {pipeline_mode = #tpu.pipeline_mode<synchronous>, transform_indices = @transform_13, window_bounds = array<i64: 1, 64>}, {transform_indices = @transform_14, window_bounds = array<i64: 8, 64>}, {transform_indices = @transform_15, window_bounds = array<i64: 8, 256>}]} {
    %c0 = arith.constant 0 : index
    %c0_0 = arith.constant 0 : index
    %0 = vector.load %arg1[%c0, %c0_0] : memref<8x64xf32, #tpu.memory_space<vmem>>, vector<8x64xf32>
    %1 = arith.truncf %0 : vector<8x64xf32> to vector<8x64xbf16>
    %c0_1 = arith.constant 0 : index
    %c0_2 = arith.constant 0 : index
    %2 = vector.load %arg3[%c0_1, %c0_2] : memref<64x128xbf16, #tpu.memory_space<vmem>>, vector<64x128xbf16>
    %c0_3 = arith.constant 0 : index
    %c0_4 = arith.constant 0 : index
    %3 = vector.load %arg4[%c0_3, %c0_4] : memref<1x128xf32, #tpu.memory_space<vmem>>, vector<1x128xf32>
    %cst = arith.constant dense<0.000000e+00> : vector<8x128xf32>
    %4 = tpu.matmul %1, %2, %cst {dimension_numbers = #tpu.dot_dimension_numbers<[1], [0], [0], [1], [0, 0, 1, 1], [], []>} : vector<8x64xbf16>, vector<64x128xbf16>, vector<8x128xf32> -> vector<8x128xf32>
    %5 = vector.broadcast %3 : vector<1x128xf32> to vector<8x128xf32>
    %6 = arith.addf %4, %5 : vector<8x128xf32>
    %cst_5 = arith.constant 0.000000e+00 : f32
    %7 = vector.broadcast %cst_5 : f32 to vector<8x128xf32>
    %8 = arith.maximumf %6, %7 : vector<8x128xf32>
    %9 = arith.truncf %8 : vector<8x128xf32> to vector<8x128xbf16>
    %c0_6 = arith.constant 0 : index
    %c0_7 = arith.constant 0 : index
    %10 = vector.load %arg5[%c0_6, %c0_7] : memref<128x128xbf16, #tpu.memory_space<vmem>>, vector<128x128xbf16>
    %c0_8 = arith.constant 0 : index
    %c0_9 = arith.constant 0 : index
    %11 = vector.load %arg6[%c0_8, %c0_9] : memref<1x128xf32, #tpu.memory_space<vmem>>, vector<1x128xf32>
    %cst_10 = arith.constant dense<0.000000e+00> : vector<8x128xf32>
    %12 = tpu.matmul %9, %10, %cst_10 {dimension_numbers = #tpu.dot_dimension_numbers<[1], [0], [0], [1], [0, 0, 1, 1], [], []>} : vector<8x128xbf16>, vector<128x128xbf16>, vector<8x128xf32> -> vector<8x128xf32>
    %13 = vector.broadcast %11 : vector<1x128xf32> to vector<8x128xf32>
    %14 = arith.addf %12, %13 : vector<8x128xf32>
    %cst_11 = arith.constant 0.000000e+00 : f32
    %15 = vector.broadcast %cst_11 : f32 to vector<8x128xf32>
    %16 = arith.maximumf %14, %15 : vector<8x128xf32>
    %17 = arith.truncf %16 : vector<8x128xf32> to vector<8x128xbf16>
    %c0_12 = arith.constant 0 : index
    %c0_13 = arith.constant 0 : index
    %18 = vector.load %arg7[%c0_12, %c0_13] : memref<128x256xbf16, #tpu.memory_space<vmem>>, vector<128x256xbf16>
    %c0_14 = arith.constant 0 : index
    %c0_15 = arith.constant 0 : index
    %19 = vector.load %arg8[%c0_14, %c0_15] : memref<1x256xf32, #tpu.memory_space<vmem>>, vector<1x256xf32>
    %cst_16 = arith.constant dense<0.000000e+00> : vector<8x256xf32>
    %20 = tpu.matmul %17, %18, %cst_16 {dimension_numbers = #tpu.dot_dimension_numbers<[1], [0], [0], [1], [0, 0, 1, 1], [], []>} : vector<8x128xbf16>, vector<128x256xbf16>, vector<8x256xf32> -> vector<8x256xf32>
    %21 = vector.broadcast %19 : vector<1x256xf32> to vector<8x256xf32>
    %22 = arith.addf %20, %21 : vector<8x256xf32>
    %c0_17 = arith.constant 0 : index
    %c0_18 = arith.constant 0 : index
    %23 = vector.load %arg16[%c0_17, %c0_18] : memref<8x256xf32, #tpu.memory_space<vmem>>, vector<8x256xf32>
    tpu.vector_store %arg16[%c0_17, %c0_18], %22 {strides = array<i32>} : memref<8x256xf32, #tpu.memory_space<vmem>>, vector<8x256xf32>,
    %24 = vector.extract_strided_slice %22 {offsets = [0, 0], sizes = [8, 128], strides = [1, 1]} : vector<8x256xf32> to vector<8x128xf32>
    %25 = vector.extract_strided_slice %22 {offsets = [0, 128], sizes = [8, 128], strides = [1, 1]} : vector<8x256xf32> to vector<8x128xf32>
    %cst_19 = arith.constant 5.000000e-01 : f32
    %26 = vector.broadcast %cst_19 : f32 to vector<8x128xf32>
    %27 = arith.mulf %26, %25 : vector<8x128xf32>
    %28 = math.exp %27 : vector<8x128xf32>
    %c0_20 = arith.constant 0 : index
    %c0_21 = arith.constant 0 : index
    %29 = vector.load %arg2[%c0_20, %c0_21] : memref<8x128xf32, #tpu.memory_space<vmem>>, vector<8x128xf32>
    %30 = arith.mulf %29, %28 : vector<8x128xf32>
    %31 = arith.addf %24, %30 : vector<8x128xf32>
    %32 = arith.truncf %31 : vector<8x128xf32> to vector<8x128xbf16>
    %c0_22 = arith.constant 0 : index
    %c0_23 = arith.constant 0 : index
    %33 = vector.load %arg9[%c0_22, %c0_23] : memref<128x128xbf16, #tpu.memory_space<vmem>>, vector<128x128xbf16>
    %c0_24 = arith.constant 0 : index
    %c0_25 = arith.constant 0 : index
    %34 = vector.load %arg10[%c0_24, %c0_25] : memref<1x128xf32, #tpu.memory_space<vmem>>, vector<1x128xf32>
    %cst_26 = arith.constant dense<0.000000e+00> : vector<8x128xf32>
    %35 = tpu.matmul %32, %33, %cst_26 {dimension_numbers = #tpu.dot_dimension_numbers<[1], [0], [0], [1], [0, 0, 1, 1], [], []>} : vector<8x128xbf16>, vector<128x128xbf16>, vector<8x128xf32> -> vector<8x128xf32>
    %36 = vector.broadcast %34 : vector<1x128xf32> to vector<8x128xf32>
    %37 = arith.addf %35, %36 : vector<8x128xf32>
    %cst_27 = arith.constant 0.000000e+00 : f32
    %38 = vector.broadcast %cst_27 : f32 to vector<8x128xf32>
    %39 = arith.maximumf %37, %38 : vector<8x128xf32>
    %40 = arith.truncf %39 : vector<8x128xf32> to vector<8x128xbf16>
    %c0_28 = arith.constant 0 : index
    %c0_29 = arith.constant 0 : index
    %41 = vector.load %arg11[%c0_28, %c0_29] : memref<128x128xbf16, #tpu.memory_space<vmem>>, vector<128x128xbf16>
    %c0_30 = arith.constant 0 : index
    %c0_31 = arith.constant 0 : index
    %42 = vector.load %arg12[%c0_30, %c0_31] : memref<1x128xf32, #tpu.memory_space<vmem>>, vector<1x128xf32>
    %cst_32 = arith.constant dense<0.000000e+00> : vector<8x128xf32>
    %43 = tpu.matmul %40, %41, %cst_32 {dimension_numbers = #tpu.dot_dimension_numbers<[1], [0], [0], [1], [0, 0, 1, 1], [], []>} : vector<8x128xbf16>, vector<128x128xbf16>, vector<8x128xf32> -> vector<8x128xf32>
    %44 = vector.broadcast %42 : vector<1x128xf32> to vector<8x128xf32>
    %45 = arith.addf %43, %44 : vector<8x128xf32>
    %cst_33 = arith.constant 0.000000e+00 : f32
    %46 = vector.broadcast %cst_33 : f32 to vector<8x128xf32>
    %47 = arith.maximumf %45, %46 : vector<8x128xf32>
    %48 = arith.truncf %47 : vector<8x128xf32> to vector<8x128xbf16>
    %c0_34 = arith.constant 0 : index
    %c0_35 = arith.constant 0 : index
    %49 = vector.load %arg13[%c0_34, %c0_35] : memref<128x64xbf16, #tpu.memory_space<vmem>>, vector<128x64xbf16>
    %c0_36 = arith.constant 0 : index
    %c0_37 = arith.constant 0 : index
    %50 = vector.load %arg14[%c0_36, %c0_37] : memref<1x64xf32, #tpu.memory_space<vmem>>, vector<1x64xf32>
    %cst_38 = arith.constant dense<0.000000e+00> : vector<8x64xf32>
    %51 = tpu.matmul %48, %49, %cst_38 {dimension_numbers = #tpu.dot_dimension_numbers<[1], [0], [0], [1], [0, 0, 1, 1], [], []>} : vector<8x128xbf16>, vector<128x64xbf16>, vector<8x64xf32> -> vector<8x64xf32>
    %52 = vector.broadcast %50 : vector<1x64xf32> to vector<8x64xf32>
    %53 = arith.addf %51, %52 : vector<8x64xf32>
    %54 = arith.truncf %53 : vector<8x64xf32> to vector<8x64xbf16>
    %c0_39 = arith.constant 0 : index
    %c0_40 = arith.constant 0 : index
    %55 = vector.load %arg15[%c0_39, %c0_40] : memref<8x64xbf16, #tpu.memory_space<vmem>>, vector<8x64xbf16>
    tpu.vector_store %arg15[%c0_39, %c0_40], %54 {strides = array<i32>} : memref<8x64xbf16, #tpu.memory_space<vmem>>, vector<8x64xbf16>,
    return
  }
  func.func @transform_0(%arg0: i32) -> (i32, i32) {
    %c0_i32 = arith.constant 0 : i32
    %c0_i32_0 = arith.constant 0 : i32
    return %arg0, %c0_i32 : i32, i32
  }
  func.func @transform_1(%arg0: i32) -> (i32, i32) {
    %c0_i32 = arith.constant 0 : i32
    %c0_i32_0 = arith.constant 0 : i32
    return %arg0, %c0_i32 : i32, i32
  }
  func.func @transform_2(%arg0: i32) -> (i32, i32) {
    %c0_i32 = arith.constant 0 : i32
    %c0_i32_0 = arith.constant 0 : i32
    %c0_i32_1 = arith.constant 0 : i32
    return %c0_i32, %c0_i32_0 : i32, i32
  }
  func.func @transform_3(%arg0: i32) -> (i32, i32) {
    %c0_i32 = arith.constant 0 : i32
    %c0_i32_0 = arith.constant 0 : i32
    %c0_i32_1 = arith.constant 0 : i32
    return %c0_i32, %c0_i32_0 : i32, i32
  }
  func.func @transform_4(%arg0: i32) -> (i32, i32) {
    %c0_i32 = arith.constant 0 : i32
    %c0_i32_0 = arith.constant 0 : i32
    %c0_i32_1 = arith.constant 0 : i32
    return %c0_i32, %c0_i32_0 : i32, i32
  }
  func.func @transform_5(%arg0: i32) -> (i32, i32) {
    %c0_i32 = arith.constant 0 : i32
    %c0_i32_0 = arith.constant 0 : i32
    %c0_i32_1 = arith.constant 0 : i32
    return %c0_i32, %c0_i32_0 : i32, i32
  }
  func.func @transform_6(%arg0: i32) -> (i32, i32) {
    %c0_i32 = arith.constant 0 : i32
    %c0_i32_0 = arith.constant 0 : i32
    %c0_i32_1 = arith.constant 0 : i32
    return %c0_i32, %c0_i32_0 : i32, i32
  }
  func.func @transform_7(%arg0: i32) -> (i32, i32) {
    %c0_i32 = arith.constant 0 : i32
    %c0_i32_0 = arith.constant 0 : i32
    %c0_i32_1 = arith.constant 0 : i32
    return %c0_i32, %c0_i32_0 : i32, i32
  }
  func.func @transform_8(%arg0: i32) -> (i32, i32) {
    %c0_i32 = arith.constant 0 : i32
    %c0_i32_0 = arith.constant 0 : i32
    %c0_i32_1 = arith.constant 0 : i32
    return %c0_i32, %c0_i32_0 : i32, i32
  }
  func.func @transform_9(%arg0: i32) -> (i32, i32) {
    %c0_i32 = arith.constant 0 : i32
    %c0_i32_0 = arith.constant 0 : i32
    %c0_i32_1 = arith.constant 0 : i32
    return %c0_i32, %c0_i32_0 : i32, i32
  }
  func.func @transform_10(%arg0: i32) -> (i32, i32) {
    %c0_i32 = arith.constant 0 : i32
    %c0_i32_0 = arith.constant 0 : i32
    %c0_i32_1 = arith.constant 0 : i32
    return %c0_i32, %c0_i32_0 : i32, i32
  }
  func.func @transform_11(%arg0: i32) -> (i32, i32) {
    %c0_i32 = arith.constant 0 : i32
    %c0_i32_0 = arith.constant 0 : i32
    %c0_i32_1 = arith.constant 0 : i32
    return %c0_i32, %c0_i32_0 : i32, i32
  }
  func.func @transform_12(%arg0: i32) -> (i32, i32) {
    %c0_i32 = arith.constant 0 : i32
    %c0_i32_0 = arith.constant 0 : i32
    %c0_i32_1 = arith.constant 0 : i32
    return %c0_i32, %c0_i32_0 : i32, i32
  }
  func.func @transform_13(%arg0: i32) -> (i32, i32) {
    %c0_i32 = arith.constant 0 : i32
    %c0_i32_0 = arith.constant 0 : i32
    %c0_i32_1 = arith.constant 0 : i32
    return %c0_i32, %c0_i32_0 : i32, i32
  }
  func.func @transform_14(%arg0: i32) -> (i32, i32) {
    %c0_i32 = arith.constant 0 : i32
    %c0_i32_0 = arith.constant 0 : i32
    return %arg0, %c0_i32 : i32, i32
  }
  func.func @transform_15(%arg0: i32) -> (i32, i32) {
    %c0_i32 = arith.constant 0 : i32
    %c0_i32_0 = arith.constant 0 : i32
    return %arg0, %c0_i32 : i32, i32
  }
}

</mosaic_0001>

<llo_original>
// kernel: _lambda_.1
$region0: #{_lambda_.1}
  #allocation0 [shape = 'u32[]', space=smem, size = 0x4, offset = 0x4, fixed_abs, tag = 'smem constant byte address 0x4 - core index']
  #allocation1 [shape = 'u32[72,128]{1,0:T(1,128)}', space=vmem, size = 0x9000, scoped, tag = 'internal scratch']
  %s0 = inlined_call_operand.vmem [shape: f32[8,64], index: 0, kind: input, shape index: {}]
  %s1 = inlined_call_operand.vmem [shape: f32[8,128], index: 1, kind: input, shape index: {}]
  %s2 = inlined_call_operand.hbm [shape: bf16[64,128], index: 2, kind: input, shape index: {}]
  %s3 = inlined_call_operand.vmem [shape: f32[1,128], index: 3, kind: input, shape index: {}]
  %s4 = inlined_call_operand.hbm [shape: bf16[128,128], index: 4, kind: input, shape index: {}]
  %s5 = inlined_call_operand.vmem [shape: f32[1,128], index: 5, kind: input, shape index: {}]
  %s6 = inlined_call_operand.hbm [shape: bf16[128,256], index: 6, kind: input, shape index: {}]
  %s7 = inlined_call_operand.vmem [shape: f32[1,256], index: 7, kind: input, shape index: {}]
  %s8 = inlined_call_operand.hbm [shape: bf16[128,128], index: 8, kind: input, shape index: {}]
  %s9 = inlined_call_operand.vmem [shape: f32[1,128], index: 9, kind: input, shape index: {}]
  %s10 = inlined_call_operand.hbm [shape: bf16[128,128], index: 10, kind: input, shape index: {}]
  %s11 = inlined_call_operand.vmem [shape: f32[1,128], index: 11, kind: input, shape index: {}]
  %s12 = inlined_call_operand.hbm [shape: bf16[128,64], index: 12, kind: input, shape index: {}]
  %s13 = inlined_call_operand.vmem [shape: f32[1,64], index: 13, kind: input, shape index: {}]
  %s14 = inlined_call_operand.hbm [shape: bf16[8,64], index: 14, kind: output, shape index: {0}]
  %s15 = inlined_call_operand.vmem [shape: f32[8,256], index: 15, kind: output, shape index: {1}]
  %16 = xla_tuple %s14, %s15
  %s17 = sld [smem:[#allocation0]]
  $region98: #{_lambda_.1} parent=0
    _
  %s19 = ssub.s32 1, %s17
  %s20 = scalar_select 0, %s19, %s17
  $region1: #{_lambda_.1} parent=0
    #allocation2 [shape = 'u8[16384]{0}', space=vmem, size = 0x4000, scoped, tag = 'input window, operand 2, single buffered']
    #allocation3 [shape = 's32[1]{0}', space=sflag, size = 0x4, scoped, tag = 'scoped memory for _lambda_.1']
    #allocation4 [shape = 's32[1]{0}', space=sflag, size = 0x4, scoped, tag = 'scoped memory for _lambda_.1']
    #allocation5 [shape = 'u8[32768]{0}', space=vmem, size = 0x8000, scoped, tag = 'input window, operand 4, single buffered']
    #allocation6 [shape = 's32[1]{0}', space=sflag, size = 0x4, scoped, tag = 'scoped memory for _lambda_.1']
    #allocation7 [shape = 'u8[65536]{0}', space=vmem, size = 0x10000, scoped, tag = 'input window, operand 6, single buffered']
    #allocation8 [shape = 'u8[32768]{0}', space=vmem, size = 0x8000, scoped, tag = 'input window, operand 8, single buffered']
    #allocation9 [shape = 's32[1]{0}', space=sflag, size = 0x4, scoped, tag = 'scoped memory for _lambda_.1']
    #allocation10 [shape = 'u8[32768]{0}', space=vmem, size = 0x8000, scoped, tag = 'input window, operand 10, single buffered']
    #allocation11 [shape = 'u8[32768]{0}', space=vmem, size = 0x8000, scoped, tag = 'input window, operand 12, single buffered']
    #allocation12 [shape = 's32[1]{0}', space=sflag, size = 0x4, scoped, tag = 'scoped memory for _lambda_.1']
    #allocation13 [shape = 'u8[2048]{0}', space=vmem, size = 0x800, scoped, tag = 'output window, operand 0, single buffered']
    %21 = vsyncpa [#allocation3], 0
    %22 = vsyncpa [#allocation6], 0
    %23 = vsyncpa [#allocation9], 0
    %24 = vsyncpa [#allocation12], 0
    %25 = vsyncpa [#allocation4], 0
    // Predicated region
    $region2: #{_lambda_.1} parent=1 // pred_check
      _
    $region3: #{_lambda_.1} parent=1 // pred_check_branch
      %27 = sbr.rel (0) target = $region5
    $region4: #{_lambda_.1} parent=1 // pred_region
      _
    $region5: #{_lambda_.1} parent=1 // pred_fallthru
      _
    // Predicated region
    $region6: #{_lambda_.1} parent=1 // pred_check
      _
    $region7: #{_lambda_.1} parent=1 // pred_check_branch
      %29 = sbr.rel (0) target = $region9
    $region8: #{_lambda_.1} parent=1 // pred_region
      _
    $region9: #{_lambda_.1} parent=1 // pred_fallthru
      _
    // Predicated region
    $region10: #{_lambda_.1} parent=1 // pred_check
      _
    $region11: #{_lambda_.1} parent=1 // pred_check_branch
      %31 = sbr.rel (0) target = $region13
    $region12: #{_lambda_.1} parent=1 // pred_region
      %33 = vsyncadd [#allocation3], 0
      %s34 = sshll.u32 %s2, 4
      %s35 = int_to_ptr.hbm [resolvable:$true] %s34
      %s36 = sshll.u32 [#allocation2], 4
      %s37 = int_to_ptr.vmem [resolvable:$true] %s36
      %42 = dma.hbm_to_vmem [thread:$0]  %s35, 512, %s37, [#allocation3], 64, 64, 4
    $region13: #{_lambda_.1} parent=1 // pred_fallthru
      _
    // Predicated region
    $region14: #{_lambda_.1} parent=1 // pred_check
      _
    $region15: #{_lambda_.1} parent=1 // pred_check_branch
      %44 = sbr.rel (0) target = $region17
    $region16: #{_lambda_.1} parent=1 // pred_region
      _
    $region17: #{_lambda_.1} parent=1 // pred_fallthru
      _
    // Predicated region
    $region18: #{_lambda_.1} parent=1 // pred_check
      _
    $region19: #{_lambda_.1} parent=1 // pred_check_branch
      %46 = sbr.rel (0) target = $region21
    $region20: #{_lambda_.1} parent=1 // pred_region
      %48 = vsyncadd [#allocation6], 0
      %s49 = sshll.u32 %s4, 4
      %s50 = int_to_ptr.hbm [resolvable:$true] %s49
      %s51 = sshll.u32 [#allocation5], 4
      %s52 = int_to_ptr.vmem [resolvable:$true] %s51
      %57 = dma.hbm_to_vmem [thread:$0]  %s50, 1024, %s52, [#allocation6], 64, 64, 4
    $region21: #{_lambda_.1} parent=1 // pred_fallthru
      _
    // Predicated region
    $region22: #{_lambda_.1} parent=1 // pred_check
      _
    $region23: #{_lambda_.1} parent=1 // pred_check_branch
      %59 = sbr.rel (0) target = $region25
    $region24: #{_lambda_.1} parent=1 // pred_region
      _
    $region25: #{_lambda_.1} parent=1 // pred_fallthru
      _
    // Predicated region
    $region26: #{_lambda_.1} parent=1 // pred_check
      _
    $region27: #{_lambda_.1} parent=1 // pred_check_branch
      %61 = sbr.rel (0) target = $region29
    $region28: #{_lambda_.1} parent=1 // pred_region
      %63 = vsyncadd [#allocation6], 0
      %s64 = sshll.u32 %s6, 4
      %s65 = int_to_ptr.hbm [resolvable:$true] %s64
      %s66 = sshll.u32 [#allocation7], 4
      %s67 = int_to_ptr.vmem [resolvable:$true] %s66
      %72 = dma.hbm_to_vmem [thread:$0]  %s65, 2048, %s67, [#allocation6], 128, 128, 8
    $region29: #{_lambda_.1} parent=1 // pred_fallthru
      _
    // Predicated region
    $region30: #{_lambda_.1} parent=1 // pred_check
      _
    $region31: #{_lambda_.1} parent=1 // pred_check_branch
      %74 = sbr.rel (0) target = $region33
    $region32: #{_lambda_.1} parent=1 // pred_region
      _
    $region33: #{_lambda_.1} parent=1 // pred_fallthru
      _
    // Predicated region
    $region34: #{_lambda_.1} parent=1 // pred_check
      _
    $region35: #{_lambda_.1} parent=1 // pred_check_branch
      %76 = sbr.rel (0) target = $region37
    $region36: #{_lambda_.1} parent=1 // pred_region
      %78 = vsyncadd [#allocation9], 0
      %s79 = sshll.u32 %s8, 4
      %s80 = int_to_ptr.hbm [resolvable:$true] %s79
      %s81 = sshll.u32 [#allocation8], 4
      %s82 = int_to_ptr.vmem [resolvable:$true] %s81
      %87 = dma.hbm_to_vmem [thread:$0]  %s80, 1024, %s82, [#allocation9], 64, 64, 4
    $region37: #{_lambda_.1} parent=1 // pred_fallthru
      _
    // Predicated region
    $region38: #{_lambda_.1} parent=1 // pred_check
      _
    $region39: #{_lambda_.1} parent=1 // pred_check_branch
      %89 = sbr.rel (0) target = $region41
    $region40: #{_lambda_.1} parent=1 // pred_region
      _
    $region41: #{_lambda_.1} parent=1 // pred_fallthru
      _
    // Predicated region
    $region42: #{_lambda_.1} parent=1 // pred_check
      _
    $region43: #{_lambda_.1} parent=1 // pred_check_branch
      %91 = sbr.rel (0) target = $region45
    $region44: #{_lambda_.1} parent=1 // pred_region
      %93 = vsyncadd [#allocation9], 0
      %s94 = sshll.u32 %s10, 4
      %s95 = int_to_ptr.hbm [resolvable:$true] %s94
      %s96 = sshll.u32 [#allocation10], 4
      %s97 = int_to_ptr.vmem [resolvable:$true] %s96
      %102 = dma.hbm_to_vmem [thread:$0]  %s95, 1024, %s97, [#allocation9], 64, 64, 4
    $region45: #{_lambda_.1} parent=1 // pred_fallthru
      _
    // Predicated region
    $region46: #{_lambda_.1} parent=1 // pred_check
      _
    $region47: #{_lambda_.1} parent=1 // pred_check_branch
      %104 = sbr.rel (0) target = $region49
    $region48: #{_lambda_.1} parent=1 // pred_region
      _
    $region49: #{_lambda_.1} parent=1 // pred_fallthru
      _
    // Predicated region
    $region50: #{_lambda_.1} parent=1 // pred_check
      _
    $region51: #{_lambda_.1} parent=1 // pred_check_branch
      %106 = sbr.rel (0) target = $region53
    $region52: #{_lambda_.1} parent=1 // pred_region
      %108 = vsyncadd [#allocation12], 0
      %s109 = sshll.u32 %s12, 4
      %s110 = int_to_ptr.hbm [resolvable:$true] %s109
      %s111 = sshll.u32 [#allocation11], 4
      %s112 = int_to_ptr.vmem [resolvable:$true] %s111
      %117 = dma.hbm_to_vmem [thread:$0]  %s110, 1024, %s112, [#allocation12], 64, 64, 4
    $region53: #{_lambda_.1} parent=1 // pred_fallthru
      _
    // Predicated region
    $region54: #{_lambda_.1} parent=1 // pred_check
      _
    $region55: #{_lambda_.1} parent=1 // pred_check_branch
      %119 = sbr.rel (0) target = $region57
    $region56: #{_lambda_.1} parent=1 // pred_region
      _
    $region57: #{_lambda_.1} parent=1 // pred_fallthru
      _
    // Predicated region
    $region58: #{_lambda_.1} parent=1 // pred_check
      _
    $region59: #{_lambda_.1} parent=1 // pred_check_branch
      %121 = sbr.rel (0) target = $region61
    $region60: #{_lambda_.1} parent=1 // pred_region
      %123 = dma.done [#allocation3], 512
    $region61: #{_lambda_.1} parent=1 // pred_fallthru
      _
    // Predicated region
    $region62: #{_lambda_.1} parent=1 // pred_check
      _
    $region63: #{_lambda_.1} parent=1 // pred_check_branch
      %125 = sbr.rel (0) target = $region65
    $region64: #{_lambda_.1} parent=1 // pred_region
      %127 = dma.done [#allocation6], 1024
    $region65: #{_lambda_.1} parent=1 // pred_fallthru
      _
    // Predicated region
    $region66: #{_lambda_.1} parent=1 // pred_check
      _
    $region67: #{_lambda_.1} parent=1 // pred_check_branch
      %129 = sbr.rel (0) target = $region69
    $region68: #{_lambda_.1} parent=1 // pred_region
      %131 = dma.done [#allocation6], 2048
    $region69: #{_lambda_.1} parent=1 // pred_fallthru
      _
    // Predicated region
    $region70: #{_lambda_.1} parent=1 // pred_check
      _
    $region71: #{_lambda_.1} parent=1 // pred_check_branch
      %133 = sbr.rel (0) target = $region73
    $region72: #{_lambda_.1} parent=1 // pred_region
      %135 = dma.done [#allocation9], 1024
    $region73: #{_lambda_.1} parent=1 // pred_fallthru
      _
    // Predicated region
    $region74: #{_lambda_.1} parent=1 // pred_check
      _
    $region75: #{_lambda_.1} parent=1 // pred_check_branch
      %137 = sbr.rel (0) target = $region77
    $region76: #{_lambda_.1} parent=1 // pred_region
      %139 = dma.done [#allocation9], 1024
    $region77: #{_lambda_.1} parent=1 // pred_fallthru
      _
    // Predicated region
    $region78: #{_lambda_.1} parent=1 // pred_check
      _
    $region79: #{_lambda_.1} parent=1 // pred_check_branch
      %141 = sbr.rel (0) target = $region81
    $region80: #{_lambda_.1} parent=1 // pred_region
      %143 = dma.done [#allocation12], 1024
    $region81: #{_lambda_.1} parent=1 // pred_fallthru
      _
    %v145 = vld [vmem:[%s0] sm:$0xff]
    %v146 = vpack.c.bf16 %v145, %v145
    %v147 = vld [vmem:[#allocation2] sm:$0xf]
    %v148 = vld [vmem:[#allocation2 + $0x4] sm:$0xf]
    %v149 = vld [vmem:[#allocation2 + $0x8] sm:$0xf]
    %v150 = vld [vmem:[#allocation2 + $0xc] sm:$0xf]
    %v151 = vld [vmem:[#allocation2 + $0x10] sm:$0xf]
    %v152 = vld [vmem:[#allocation2 + $0x14] sm:$0xf]
    %v153 = vld [vmem:[#allocation2 + $0x18] sm:$0xf]
    %v154 = vld [vmem:[#allocation2 + $0x1c] sm:$0xf]
    %v155 = vld [vmem:[%s3] sm:$0x1]
    %v157 = vperm.slane %v155, 0
    %v167 = vunpack.c.l.b16 %v147
    %v168 = vunpack.c.l.b16 %v148
    %v169 = vunpack.c.l.b16 %v149
    %v170 = vunpack.c.l.b16 %v150
    %v171 = vunpack.c.l.b16 %v151
    %v172 = vunpack.c.l.b16 %v152
    %v173 = vunpack.c.l.b16 %v153
    %v174 = vunpack.c.l.b16 %v154
    %v175 = vpack.c.b16 %v168, %v167
    %v176 = vpack.c.b16 %v170, %v169
    %v177 = vpack.c.b16 %v172, %v171
    %v178 = vpack.c.b16 %v174, %v173
    %vm183 = vcmask 523264
    %v185 = vsel %vm183, %v146, 0
    %187 = vmatpush.bf16.msra.mxu0 0
    %188 = vmatpush.bf16.msra.mxu0 0
    %189 = vmatpush.bf16.msra.mxu0 0
    %190 = vmatpush.bf16.msra.mxu0 0
    %191 = vmatpush.bf16.msra.mxu0 %v178
    %192 = vmatpush.bf16.msra.mxu0 %v177
    %193 = vmatpush.bf16.msra.mxu0 %v176
    %194 = vmatpush.bf16.msra.mxu0 %v175
    %195 = vmatmul.bf16.gmra.mxu0 %v185
    %v196 = vpop.f32.mrf.mxu0
    %v197 = vadd.f32 %v157, %v196
    %v198 = vpop.f32.mrf.mxu0
    %199 = vdwg.mxu0
    %v200 = vmax.f32 %v197, 0.0
    %v201 = vpack.c.bf16 %v200, %v200
    %v202 = vld [vmem:[#allocation5] sm:$0xf]
    %v203 = vld [vmem:[#allocation5 + $0x4] sm:$0xf]
    %v204 = vld [vmem:[#allocation5 + $0x8] sm:$0xf]
    %v205 = vld [vmem:[#allocation5 + $0xc] sm:$0xf]
    %v206 = vld [vmem:[#allocation5 + $0x10] sm:$0xf]
    %v207 = vld [vmem:[#allocation5 + $0x14] sm:$0xf]
    %v208 = vld [vmem:[#allocation5 + $0x18] sm:$0xf]
    %v209 = vld [vmem:[#allocation5 + $0x1c] sm:$0xf]
    %v210 = vld [vmem:[#allocation5 + $0x20] sm:$0xf]
    %v211 = vld [vmem:[#allocation5 + $0x24] sm:$0xf]
    %v212 = vld [vmem:[#allocation5 + $0x28] sm:$0xf]
    %v213 = vld [vmem:[#allocation5 + $0x2c] sm:$0xf]
    %v214 = vld [vmem:[#allocation5 + $0x30] sm:$0xf]
    %v215 = vld [vmem:[#allocation5 + $0x34] sm:$0xf]
    %v216 = vld [vmem:[#allocation5 + $0x38] sm:$0xf]
    %v217 = vld [vmem:[#allocation5 + $0x3c] sm:$0xf]
    %v218 = vld [vmem:[%s5] sm:$0x1]
    %v220 = vperm.slane %v218, 0
    %v238 = vunpack.c.l.b16 %v202
    %v239 = vunpack.c.l.b16 %v203
    %v240 = vunpack.c.l.b16 %v204
    %v241 = vunpack.c.l.b16 %v205
    %v242 = vunpack.c.l.b16 %v206
    %v243 = vunpack.c.l.b16 %v207
    %v244 = vunpack.c.l.b16 %v208
    %v245 = vunpack.c.l.b16 %v209
    %v246 = vunpack.c.l.b16 %v210
    %v247 = vunpack.c.l.b16 %v211
    %v248 = vunpack.c.l.b16 %v212
    %v249 = vunpack.c.l.b16 %v213
    %v250 = vunpack.c.l.b16 %v214
    %v251 = vunpack.c.l.b16 %v215
    %v252 = vunpack.c.l.b16 %v216
    %v253 = vunpack.c.l.b16 %v217
    %v254 = vpack.c.b16 %v239, %v238
    %v255 = vpack.c.b16 %v241, %v240
    %v256 = vpack.c.b16 %v243, %v242
    %v257 = vpack.c.b16 %v245, %v244
    %v258 = vpack.c.b16 %v247, %v246
    %v259 = vpack.c.b16 %v249, %v248
    %v260 = vpack.c.b16 %v251, %v250
    %v261 = vpack.c.b16 %v253, %v252
    %270 = vmatpush.bf16.msra.mxu0 %v261
    %271 = vmatpush.bf16.msra.mxu0 %v260
    %272 = vmatpush.bf16.msra.mxu0 %v259
    %273 = vmatpush.bf16.msra.mxu0 %v258
    %274 = vmatpush.bf16.msra.mxu0 %v257
    %275 = vmatpush.bf16.msra.mxu0 %v256
    %276 = vmatpush.bf16.msra.mxu0 %v255
    %277 = vmatpush.bf16.msra.mxu0 %v254
    %278 = vmatmul.bf16.gmra.mxu0 %v201
    %v279 = vpop.f32.mrf.mxu0
    %v280 = vadd.f32 %v220, %v279
    %v281 = vpop.f32.mrf.mxu0
    %282 = vdwg.mxu0
    %v283 = vmax.f32 %v280, 0.0
    %v284 = vpack.c.bf16 %v283, %v283
    %v285 = vld [vmem:[#allocation7] sm:$0xff]
    %v286 = vld [vmem:[#allocation7 + $0x8] sm:$0xff]
    %v287 = vld [vmem:[#allocation7 + $0x10] sm:$0xff]
    %v288 = vld [vmem:[#allocation7 + $0x18] sm:$0xff]
    %v289 = vld [vmem:[#allocation7 + $0x20] sm:$0xff]
    %v290 = vld [vmem:[#allocation7 + $0x28] sm:$0xff]
    %v291 = vld [vmem:[#allocation7 + $0x30] sm:$0xff]
    %v292 = vld [vmem:[#allocation7 + $0x38] sm:$0xff]
    %v293 = vld [vmem:[#allocation7 + $0x40] sm:$0xff]
    %v294 = vld [vmem:[#allocation7 + $0x48] sm:$0xff]
    %v295 = vld [vmem:[#allocation7 + $0x50] sm:$0xff]
    %v296 = vld [vmem:[#allocation7 + $0x58] sm:$0xff]
    %v297 = vld [vmem:[#allocation7 + $0x60] sm:$0xff]
    %v298 = vld [vmem:[#allocation7 + $0x68] sm:$0xff]
    %v299 = vld [vmem:[#allocation7 + $0x70] sm:$0xff]
    %v300 = vld [vmem:[#allocation7 + $0x78] sm:$0xff]
    %v301 = vld [vmem:[%s7] sm:$0x3]
    %v303 = vperm.slane %v301, 0
    %v304 = vperm.slane %v301, 1
    %v323 = vunpack.c.l.b16 %v285
    %v324 = vunpack.c.h.b16 %v285
    %v325 = vunpack.c.l.b16 %v286
    %v326 = vunpack.c.h.b16 %v286
    %v327 = vunpack.c.l.b16 %v287
    %v328 = vunpack.c.h.b16 %v287
    %v329 = vunpack.c.l.b16 %v288
    %v330 = vunpack.c.h.b16 %v288
    %v331 = vunpack.c.l.b16 %v289
    %v332 = vunpack.c.h.b16 %v289
    %v333 = vunpack.c.l.b16 %v290
    %v334 = vunpack.c.h.b16 %v290
    %v335 = vunpack.c.l.b16 %v291
    %v336 = vunpack.c.h.b16 %v291
    %v337 = vunpack.c.l.b16 %v292
    %v338 = vunpack.c.h.b16 %v292
    %v339 = vunpack.c.l.b16 %v293
    %v340 = vunpack.c.h.b16 %v293
    %v341 = vunpack.c.l.b16 %v294
    %v342 = vunpack.c.h.b16 %v294
    %v343 = vunpack.c.l.b16 %v295
    %v344 = vunpack.c.h.b16 %v295
    %v345 = vunpack.c.l.b16 %v296
    %v346 = vunpack.c.h.b16 %v296
    %v347 = vunpack.c.l.b16 %v297
    %v348 = vunpack.c.h.b16 %v297
    %v349 = vunpack.c.l.b16 %v298
    %v350 = vunpack.c.h.b16 %v298
    %v351 = vunpack.c.l.b16 %v299
    %v352 = vunpack.c.h.b16 %v299
    %v353 = vunpack.c.l.b16 %v300
    %v354 = vunpack.c.h.b16 %v300
    %v355 = vpack.c.b16 %v325, %v323
    %v356 = vpack.c.b16 %v326, %v324
    %v357 = vpack.c.b16 %v329, %v327
    %v358 = vpack.c.b16 %v330, %v328
    %v359 = vpack.c.b16 %v333, %v331
    %v360 = vpack.c.b16 %v334, %v332
    %v361 = vpack.c.b16 %v337, %v335
    %v362 = vpack.c.b16 %v338, %v336
    %v363 = vpack.c.b16 %v341, %v339
    %v364 = vpack.c.b16 %v342, %v340
    %v365 = vpack.c.b16 %v345, %v343
    %v366 = vpack.c.b16 %v346, %v344
    %v367 = vpack.c.b16 %v349, %v347
    %v368 = vpack.c.b16 %v350, %v348
    %v369 = vpack.c.b16 %v353, %v351
    %v370 = vpack.c.b16 %v354, %v352
    %387 = vmatpush.bf16.msra.mxu0 %v369
    %388 = vmatpush.bf16.msra.mxu0 %v367
    %389 = vmatpush.bf16.msra.mxu0 %v365
    %390 = vmatpush.bf16.msra.mxu0 %v363
    %391 = vmatpush.bf16.msra.mxu0 %v361
    %392 = vmatpush.bf16.msra.mxu0 %v359
    %393 = vmatpush.bf16.msra.mxu0 %v357
    %394 = vmatpush.bf16.msra.mxu0 %v355
    %395 = vmatmul.bf16.gmra.mxu0 %v284
    %v396 = vpop.f32.mrf.mxu0
    %v397 = vadd.f32 %v303, %v396
    %v398 = vpop.f32.mrf.mxu0
    %399 = vdwg.mxu0
    %400 = vmatpush.bf16.msra.mxu0 %v370
    %401 = vmatpush.bf16.msra.mxu0 %v368
    %402 = vmatpush.bf16.msra.mxu0 %v366
    %403 = vmatpush.bf16.msra.mxu0 %v364
    %404 = vmatpush.bf16.msra.mxu0 %v362
    %405 = vmatpush.bf16.msra.mxu0 %v360
    %406 = vmatpush.bf16.msra.mxu0 %v358
    %407 = vmatpush.bf16.msra.mxu0 %v356
    %408 = vmatmul.bf16.gmra.mxu0 %v284
    %v409 = vpop.f32.mrf.mxu0
    %v410 = vadd.f32 %v304, %v409
    %v411 = vpop.f32.mrf.mxu0
    %412 = vdwg.mxu0
    %413 = vst [vmem:[%s15] sm:$0xff] %v397
    %414 = vst [vmem:[%s15 + $0x8] sm:$0xff] %v410
    %v415 = vmul.f32 %v410, 0.5
    %v416 = vmul.f32 %v415, 1.442695
    %v417 = vpow.pop %v416
    %v418 = vld [vmem:[%s1] sm:$0xff]
    %v419 = vmul.f32 %v418, %v417
    %v420 = vadd.f32 %v397, %v419
    %v421 = vpack.c.bf16 %v420, %v420
    %v422 = vld [vmem:[#allocation8] sm:$0xf]
    %v423 = vld [vmem:[#allocation8 + $0x4] sm:$0xf]
    %v424 = vld [vmem:[#allocation8 + $0x8] sm:$0xf]
    %v425 = vld [vmem:[#allocation8 + $0xc] sm:$0xf]
    %v426 = vld [vmem:[#allocation8 + $0x10] sm:$0xf]
    %v427 = vld [vmem:[#allocation8 + $0x14] sm:$0xf]
    %v428 = vld [vmem:[#allocation8 + $0x18] sm:$0xf]
    %v429 = vld [vmem:[#allocation8 + $0x1c] sm:$0xf]
    %v430 = vld [vmem:[#allocation8 + $0x20] sm:$0xf]
    %v431 = vld [vmem:[#allocation8 + $0x24] sm:$0xf]
    %v432 = vld [vmem:[#allocation8 + $0x28] sm:$0xf]
    %v433 = vld [vmem:[#allocation8 + $0x2c] sm:$0xf]
    %v434 = vld [vmem:[#allocation8 + $0x30] sm:$0xf]
    %v435 = vld [vmem:[#allocation8 + $0x34] sm:$0xf]
    %v436 = vld [vmem:[#allocation8 + $0x38] sm:$0xf]
    %v437 = vld [vmem:[#allocation8 + $0x3c] sm:$0xf]
    %v438 = vld [vmem:[%s9] sm:$0x1]
    %v440 = vperm.slane %v438, 0
    %v458 = vunpack.c.l.b16 %v422
    %v459 = vunpack.c.l.b16 %v423
    %v460 = vunpack.c.l.b16 %v424
    %v461 = vunpack.c.l.b16 %v425
    %v462 = vunpack.c.l.b16 %v426
    %v463 = vunpack.c.l.b16 %v427
    %v464 = vunpack.c.l.b16 %v428
    %v465 = vunpack.c.l.b16 %v429
    %v466 = vunpack.c.l.b16 %v430
    %v467 = vunpack.c.l.b16 %v431
    %v468 = vunpack.c.l.b16 %v432
    %v469 = vunpack.c.l.b16 %v433
    %v470 = vunpack.c.l.b16 %v434
    %v471 = vunpack.c.l.b16 %v435
    %v472 = vunpack.c.l.b16 %v436
    %v473 = vunpack.c.l.b16 %v437
    %v474 = vpack.c.b16 %v459, %v458
    %v475 = vpack.c.b16 %v461, %v460
    %v476 = vpack.c.b16 %v463, %v462
    %v477 = vpack.c.b16 %v465, %v464
    %v478 = vpack.c.b16 %v467, %v466
    %v479 = vpack.c.b16 %v469, %v468
    %v480 = vpack.c.b16 %v471, %v470
    %v481 = vpack.c.b16 %v473, %v472
    %490 = vmatpush.bf16.msra.mxu0 %v481
    %491 = vmatpush.bf16.msra.mxu0 %v480
    %492 = vmatpush.bf16.msra.mxu0 %v479
    %493 = vmatpush.bf16.msra.mxu0 %v478
    %494 = vmatpush.bf16.msra.mxu0 %v477
    %495 = vmatpush.bf16.msra.mxu0 %v476
    %496 = vmatpush.bf16.msra.mxu0 %v475
    %497 = vmatpush.bf16.msra.mxu0 %v474
    %498 = vmatmul.bf16.gmra.mxu0 %v421
    %v499 = vpop.f32.mrf.mxu0
    %v500 = vadd.f32 %v440, %v499
    %v501 = vpop.f32.mrf.mxu0
    %502 = vdwg.mxu0
    %v503 = vmax.f32 %v500, 0.0
    %v504 = vpack.c.bf16 %v503, %v503
    %v505 = vld [vmem:[#allocation10] sm:$0xf]
    %v506 = vld [vmem:[#allocation10 + $0x4] sm:$0xf]
    %v507 = vld [vmem:[#allocation10 + $0x8] sm:$0xf]
    %v508 = vld [vmem:[#allocation10 + $0xc] sm:$0xf]
    %v509 = vld [vmem:[#allocation10 + $0x10] sm:$0xf]
    %v510 = vld [vmem:[#allocation10 + $0x14] sm:$0xf]
    %v511 = vld [vmem:[#allocation10 + $0x18] sm:$0xf]
    %v512 = vld [vmem:[#allocation10 + $0x1c] sm:$0xf]
    %v513 = vld [vmem:[#allocation10 + $0x20] sm:$0xf]
    %v514 = vld [vmem:[#allocation10 + $0x24] sm:$0xf]
    %v515 = vld [vmem:[#allocation10 + $0x28] sm:$0xf]
    %v516 = vld [vmem:[#allocation10 + $0x2c] sm:$0xf]
    %v517 = vld [vmem:[#allocation10 + $0x30] sm:$0xf]
    %v518 = vld [vmem:[#allocation10 + $0x34] sm:$0xf]
    %v519 = vld [vmem:[#allocation10 + $0x38] sm:$0xf]
    %v520 = vld [vmem:[#allocation10 + $0x3c] sm:$0xf]
    %v521 = vld [vmem:[%s11] sm:$0x1]
    %v523 = vperm.slane %v521, 0
    %v541 = vunpack.c.l.b16 %v505
    %v542 = vunpack.c.l.b16 %v506
    %v543 = vunpack.c.l.b16 %v507
    %v544 = vunpack.c.l.b16 %v508
    %v545 = vunpack.c.l.b16 %v509
    %v546 = vunpack.c.l.b16 %v510
    %v547 = vunpack.c.l.b16 %v511
    %v548 = vunpack.c.l.b16 %v512
    %v549 = vunpack.c.l.b16 %v513
    %v550 = vunpack.c.l.b16 %v514
    %v551 = vunpack.c.l.b16 %v515
    %v552 = vunpack.c.l.b16 %v516
    %v553 = vunpack.c.l.b16 %v517
    %v554 = vunpack.c.l.b16 %v518
    %v555 = vunpack.c.l.b16 %v519
    %v556 = vunpack.c.l.b16 %v520
    %v557 = vpack.c.b16 %v542, %v541
    %v558 = vpack.c.b16 %v544, %v543
    %v559 = vpack.c.b16 %v546, %v545
    %v560 = vpack.c.b16 %v548, %v547
    %v561 = vpack.c.b16 %v550, %v549
    %v562 = vpack.c.b16 %v552, %v551
    %v563 = vpack.c.b16 %v554, %v553
    %v564 = vpack.c.b16 %v556, %v555
    %573 = vmatpush.bf16.msra.mxu0 %v564
    %574 = vmatpush.bf16.msra.mxu0 %v563
    %575 = vmatpush.bf16.msra.mxu0 %v562
    %576 = vmatpush.bf16.msra.mxu0 %v561
    %577 = vmatpush.bf16.msra.mxu0 %v560
    %578 = vmatpush.bf16.msra.mxu0 %v559
    %579 = vmatpush.bf16.msra.mxu0 %v558
    %580 = vmatpush.bf16.msra.mxu0 %v557
    %581 = vmatmul.bf16.gmra.mxu0 %v504
    %v582 = vpop.f32.mrf.mxu0
    %v583 = vadd.f32 %v523, %v582
    %v584 = vpop.f32.mrf.mxu0
    %585 = vdwg.mxu0
    %v586 = vmax.f32 %v583, 0.0
    %v587 = vpack.c.bf16 %v586, %v586
    %v588 = vld [vmem:[#allocation11] sm:$0xf]
    %v589 = vld [vmem:[#allocation11 + $0x4] sm:$0xf]
    %v590 = vld [vmem:[#allocation11 + $0x8] sm:$0xf]
    %v591 = vld [vmem:[#allocation11 + $0xc] sm:$0xf]
    %v592 = vld [vmem:[#allocation11 + $0x10] sm:$0xf]
    %v593 = vld [vmem:[#allocation11 + $0x14] sm:$0xf]
    %v594 = vld [vmem:[#allocation11 + $0x18] sm:$0xf]
    %v595 = vld [vmem:[#allocation11 + $0x1c] sm:$0xf]
    %v596 = vld [vmem:[#allocation11 + $0x20] sm:$0xf]
    %v597 = vld [vmem:[#allocation11 + $0x24] sm:$0xf]
    %v598 = vld [vmem:[#allocation11 + $0x28] sm:$0xf]
    %v599 = vld [vmem:[#allocation11 + $0x2c] sm:$0xf]
    %v600 = vld [vmem:[#allocation11 + $0x30] sm:$0xf]
    %v601 = vld [vmem:[#allocation11 + $0x34] sm:$0xf]
    %v602 = vld [vmem:[#allocation11 + $0x38] sm:$0xf]
    %v603 = vld [vmem:[#allocation11 + $0x3c] sm:$0xf]
    %v604 = vld [vmem:[%s13] sm:$0x1]
    %v606 = vperm.slane %v604, 0
    %v624 = vunpack.c.l.b16 %v588
    %v625 = vunpack.c.l.b16 %v589
    %v626 = vunpack.c.l.b16 %v590
    %v627 = vunpack.c.l.b16 %v591
    %v628 = vunpack.c.l.b16 %v592
    %v629 = vunpack.c.l.b16 %v593
    %v630 = vunpack.c.l.b16 %v594
    %v631 = vunpack.c.l.b16 %v595
    %v632 = vunpack.c.l.b16 %v596
    %v633 = vunpack.c.l.b16 %v597
    %v634 = vunpack.c.l.b16 %v598
    %v635 = vunpack.c.l.b16 %v599
    %v636 = vunpack.c.l.b16 %v600
    %v637 = vunpack.c.l.b16 %v601
    %v638 = vunpack.c.l.b16 %v602
    %v639 = vunpack.c.l.b16 %v603
    %v640 = vpack.c.b16 %v625, %v624
    %v641 = vpack.c.b16 %v627, %v626
    %v642 = vpack.c.b16 %v629, %v628
    %v643 = vpack.c.b16 %v631, %v630
    %v644 = vpack.c.b16 %v633, %v632
    %v645 = vpack.c.b16 %v635, %v634
    %v646 = vpack.c.b16 %v637, %v636
    %v647 = vpack.c.b16 %v639, %v638
    %656 = vmatpush.bf16.msra.mxu0 %v647
    %657 = vmatpush.bf16.msra.mxu0 %v646
    %658 = vmatpush.bf16.msra.mxu0 %v645
    %659 = vmatpush.bf16.msra.mxu0 %v644
    %660 = vmatpush.bf16.msra.mxu0 %v643
    %661 = vmatpush.bf16.msra.mxu0 %v642
    %662 = vmatpush.bf16.msra.mxu0 %v641
    %663 = vmatpush.bf16.msra.mxu0 %v640
    %664 = vmatmul.bf16.gmra.mxu0 %v587
    %v665 = vpop.f32.mrf.mxu0
    %v666 = vadd.f32 %v606, %v665
    %v667 = vpop.f32.mrf.mxu0
    %668 = vdwg.mxu0
    %v669 = vpack.c.bf16 %v666, %v666
    %vm670 = vcmask 519168
    %671 = vst.msk [vmem:[#allocation13] sm:$0xf] %vm670, %v669
    // Predicated region
    $region82: #{_lambda_.1} parent=1 // pred_check
      _
    $region83: #{_lambda_.1} parent=1 // pred_check_branch
      %673 = sbr.rel (0) target = $region85
    $region84: #{_lambda_.1} parent=1 // pred_region
      %675 = vsyncadd [#allocation4], 0
      %s677 = sshll.u32 [#allocation13], 4
      %s678 = int_to_ptr.vmem [resolvable:$true] %s677
      %s679 = sshll.u32 %s14, 4
      %s680 = int_to_ptr.hbm [resolvable:$true] %s679
      %682 = dma.vmem_to_hbm [thread:$0]  %s678, 64, %s680, [#allocation4]
    $region85: #{_lambda_.1} parent=1 // pred_fallthru
      _
    // Predicated region
    $region86: #{_lambda_.1} parent=1 // pred_check
      _
    $region87: #{_lambda_.1} parent=1 // pred_check_branch
      %684 = sbr.rel (0) target = $region89
    $region88: #{_lambda_.1} parent=1 // pred_region
      _
    $region89: #{_lambda_.1} parent=1 // pred_fallthru
      _
    // Predicated region
    $region90: #{_lambda_.1} parent=1 // pred_check
      _
    $region91: #{_lambda_.1} parent=1 // pred_check_branch
      %686 = sbr.rel (0) target = $region93
    $region92: #{_lambda_.1} parent=1 // pred_region
      %688 = dma.done [#allocation4], 64
    $region93: #{_lambda_.1} parent=1 // pred_fallthru
      _
    // Predicated region
    $region94: #{_lambda_.1} parent=1 // pred_check
      _
    $region95: #{_lambda_.1} parent=1 // pred_check_branch
      %690 = sbr.rel (0) target = $region97
    $region96: #{_lambda_.1} parent=1 // pred_region
      _
    $region97: #{_lambda_.1} parent=1 // pred_fallthru
      _
    %691 = vsyncpa [#allocation3], 1
    %692 = vsyncpa [#allocation6], 1
    %693 = vsyncpa [#allocation9], 1
    %694 = vsyncpa [#allocation12], 1
    %695 = vsyncpa [#allocation4], 1

</llo_original>
